<compile_context>
chip_gen: v5e
topology: v5e:2x2
jax: 0.10.0
libtpu: 0.0.40
codegen_flags: <defaults>
</compile_context>

<pallas_src>
import functools

import jax
import jax.numpy as jnp
from jax.experimental import pallas as pl
from jax.experimental.pallas import tpu as pltpu


def _round_up(x, m):
    return ((x + m - 1) // m) * m


def _critic_mlp_kernel(x_ref, w1_ref, b1_ref, w2_ref, b2_ref, w3_ref, b3_ref,
                       out_ref):
    """Fused transposed 3-layer MLP on one batch tile.

    x_ref  : (obs_dim, TB)  observation tile, batch on the 128-lane axis
    w*_ref : (out, in)      weights (PyTorch layout), resident in VMEM
    b*_ref : (out, 1)       f32 biases, broadcast along lanes
    out_ref: (1, TB)        lane-dense value tile
    """
    x = x_ref[...]
    h1 = jnp.tanh(
        jnp.dot(w1_ref[...], x, preferred_element_type=jnp.float32)
        + b1_ref[...])
    h2 = jnp.tanh(
        jnp.dot(w2_ref[...], h1.astype(w2_ref.dtype),
                preferred_element_type=jnp.float32) + b2_ref[...])
    out_ref[...] = (
        jnp.dot(w3_ref[...], h2.astype(w3_ref.dtype),
                preferred_element_type=jnp.float32)
        + b3_ref[...]).astype(out_ref.dtype)


def _critic_forward_impl(observation, params, *, tile_b, storage_dtype):
    B, obs_dim = observation.shape
    w1, b1 = params["w1"], params["b1"]   # (h1, obs_dim), (h1, 1)
    w2, b2 = params["w2"], params["b2"]   # (h2, h1),      (h2, 1)
    w3, b3 = params["w3"], params["b3"]   # (1,  h2),      (1, 1)
    out_dim = w3.shape[0]

    # Batch tile: multiple of the 128-lane width, capped at tile_b; pad the
    # batch so every grid step operates on a full lane-dense tile.
    tb = min(_round_up(tile_b, 128), _round_up(B, 128))
    b_pad = _round_up(B, tb)
    grid = (b_pad // tb,)

    # Put batch on the lane axis (layout plumbing, done once in the wrapper).
    x_t = observation.T                                   # (obs_dim, B)
    if b_pad != B:
        x_t = jnp.pad(x_t, ((0, 0), (0, b_pad - B)))

    if storage_dtype is not None:
        x_t = x_t.astype(storage_dtype)
        w1 = w1.astype(storage_dtype)
        w2 = w2.astype(storage_dtype)
        w3 = w3.astype(storage_dtype)
    # Biases stay f32 (tiny; added to f32 accumulators).

    itemsize = jnp.dtype(x_t.dtype).itemsize
    flops = 2 * b_pad * (w1.shape[0] * w1.shape[1]
                         + w2.shape[0] * w2.shape[1]
                         + w3.shape[0] * w3.shape[1])
    transcendentals = b_pad * (w1.shape[0] + w2.shape[0])
    weight_bytes = sum(int(a.size) * jnp.dtype(a.dtype).itemsize
                       for a in (w1, b1, w2, b2, w3, b3))
    bytes_accessed = b_pad * obs_dim * itemsize + b_pad * out_dim * 4 \
        + weight_bytes

    resident = lambda a: pl.BlockSpec(a.shape, lambda i: (0, 0))

    out_t = pl.pallas_call(
        _critic_mlp_kernel,
        out_shape=jax.ShapeDtypeStruct((out_dim, b_pad), jnp.float32),
        grid_spec=pltpu.PrefetchScalarGridSpec(
            num_scalar_prefetch=0,
            grid=grid,
            in_specs=[
                pl.BlockSpec((obs_dim, tb), lambda i: (0, i)),  # streamed obs
                resident(w1), resident(b1),                     # resident
                resident(w2), resident(b2),
                resident(w3), resident(b3),
            ],
            out_specs=pl.BlockSpec((out_dim, tb), lambda i: (0, i)),
        ),
        compiler_params=pltpu.CompilerParams(
            dimension_semantics=("parallel",)),
        cost_estimate=pl.CostEstimate(
            flops=flops,
            transcendentals=transcendentals,
            bytes_accessed=bytes_accessed),
    )(x_t, w1, b1, w2, b2, w3, b3)

    return out_t[:, :B].T                                   # (B, 1) f32


critic_forward = jax.jit(
    functools.partial(_critic_forward_impl),
    static_argnames=("tile_b", "storage_dtype"),
)


def critic_forward_api(observation, params, *, tile_b=4096, storage_dtype=None):
    """Run the Critic value approximator.  observation: (B, obs_dim) f32."""
    # TODO(synk): for truly tiny online batches (B~2 per control step), prefer
    # batching timesteps/envs into one call; a single Pallas launch is then
    # amortized over the whole rollout.
    return critic_forward(observation, params, tile_b=tile_b,
                          storage_dtype=storage_dtype)


def init_mlp_params(network_sizes, key):
    """nn.Linear-style init: U(-1/sqrt(fan_in), 1/sqrt(fan_in)).

    Weights stored (out_features, in_features) (PyTorch layout), biases (out, 1).
    """
    assert len(network_sizes) == 4, "this script implements a 3-layer MLP"
    params = {}
    names = [("w1", "b1"), ("w2", "b2"), ("w3", "b3")]
    for (wn, bn), fan_in, fan_out in zip(names, network_sizes[:-1],
                                         network_sizes[1:]):
        key, kw, kb = jax.random.split(key, 3)
        bound = 1.0 / jnp.sqrt(jnp.float32(fan_in))
        params[wn] = jax.random.uniform(kw, (fan_out, fan_in), jnp.float32,
                                        -bound, bound)
        params[bn] = jax.random.uniform(kb, (fan_out, 1), jnp.float32,
                                        -bound, bound)
    return params


def _reference(observation, p):
    h = jnp.tanh(observation @ p["w1"].T + p["b1"].T)
    h = jnp.tanh(h @ p["w2"].T + p["b2"].T)
    return h @ p["w3"].T + p["b3"].T


class Critic:
    """Thin Python wrapper reproducing the buffer bookkeeping of the nn.Module."""

    def __init__(self, network_sizes, key):
        self.params = init_mlp_params(network_sizes, key)
        self.buffers = {"value_history": []}

    def __call__(self, observation):
        value = critic_forward_api(observation, self.params)
        self.buffers["value_history"].append(value)
        return value

    def clear_buffers(self):
        self.buffers = {"value_history": []}

    def __getitem__(self, key):
        return self.buffers[key]


if __name__ == "__main__":
    key = jax.random.PRNGKey(0)
    key, k_obs, k_params = jax.random.split(key, 3)

    # network_sizes = [obs_dim, hidden, hidden, 1]
    network_sizes = [16, 32, 32, 1]
    batch = 2

    critic = Critic(network_sizes, k_params)
    observation = jax.random.normal(k_obs, (batch, network_sizes[0]),
                                    jnp.float32)

    value = jax.block_until_ready(critic(observation))
    ref = _reference(observation, critic.params)
    assert value.shape == (batch, 1)
    assert jnp.allclose(value, ref, atol=1e-4, rtol=1e-4)
    assert len(critic["value_history"]) == 1

    # Multi-tile + padding path: B not a multiple of the batch tile.
    k_obs2 = jax.random.fold_in(key, 1)
    obs2 = jax.random.normal(k_obs2, (300, network_sizes[0]), jnp.float32)
    v2 = jax.block_until_ready(
        critic_forward_api(obs2, critic.params, tile_b=128))
    ref2 = _reference(obs2, critic.params)
    assert v2.shape == (300, 1)
    assert jnp.allclose(v2, ref2, atol=1e-4, rtol=1e-4)

    # bf16 storage path (v6e/v7x HBM-bandwidth optimization); f32 accumulation,
    # so only a loose tolerance against the f32 reference is expected.
    v3 = jax.block_until_ready(
        critic_forward_api(obs2, critic.params, tile_b=128,
                           storage_dtype=jnp.bfloat16))
    assert v3.shape == (300, 1)
    assert jnp.allclose(v3, ref2, atol=5e-2, rtol=5e-2)

    print("KERNEL_OK")
</pallas_src>

<mosaic_0001>
module attributes {stable_mosaic.version = 11 : i64} {
  func.func @_critic_mlp_kernel(%arg0: i32, %arg1: memref<16x128xf32, #tpu.memory_space<vmem>>, %arg2: memref<32x16xf32, #tpu.memory_space<vmem>>, %arg3: memref<32x1xf32, #tpu.memory_space<vmem>>, %arg4: memref<32x32xf32, #tpu.memory_space<vmem>>, %arg5: memref<32x1xf32, #tpu.memory_space<vmem>>, %arg6: memref<1x32xf32, #tpu.memory_space<vmem>>, %arg7: memref<1x1xf32, #tpu.memory_space<vmem>>, %arg8: memref<1x128xf32, #tpu.memory_space<vmem>>) attributes {dimension_semantics = [#tpu.dimension_semantics<parallel>], iteration_bounds = array<i64: 1>, scalar_prefetch = 0 : i64, scratch_operands = 0 : i64, tpu.core_type = #tpu.core_type<tc>, window_params = [{transform_indices = @transform_0, window_bounds = array<i64: 16, 128>}, {pipeline_mode = #tpu.pipeline_mode<synchronous>, transform_indices = @transform_1, window_bounds = array<i64: 32, 16>}, {pipeline_mode = #tpu.pipeline_mode<synchronous>, transform_indices = @transform_2, window_bounds = array<i64: 32, 1>}, {pipeline_mode = #tpu.pipeline_mode<synchronous>, transform_indices = @transform_3, window_bounds = array<i64: 32, 32>}, {pipeline_mode = #tpu.pipeline_mode<synchronous>, transform_indices = @transform_4, window_bounds = array<i64: 32, 1>}, {pipeline_mode = #tpu.pipeline_mode<synchronous>, transform_indices = @transform_5, window_bounds = array<i64: 1, 32>}, {pipeline_mode = #tpu.pipeline_mode<synchronous>, transform_indices = @transform_6, window_bounds = array<i64: 1, 1>}, {transform_indices = @transform_7, window_bounds = array<i64: 1, 128>}]} {
    %c0 = arith.constant 0 : index
    %c0_0 = arith.constant 0 : index
    %0 = vector.load %arg1[%c0, %c0_0] : memref<16x128xf32, #tpu.memory_space<vmem>>, vector<16x128xf32>
    %c0_1 = arith.constant 0 : index
    %c0_2 = arith.constant 0 : index
    %1 = vector.load %arg2[%c0_1, %c0_2] : memref<32x16xf32, #tpu.memory_space<vmem>>, vector<32x16xf32>
    %cst = arith.constant dense<0.000000e+00> : vector<32x128xf32>
    %2 = tpu.matmul %1, %0, %cst {dimension_numbers = #tpu.dot_dimension_numbers<[1], [0], [0], [1], [0, 0, 1, 1], [], []>} : vector<32x16xf32>, vector<16x128xf32>, vector<32x128xf32> -> vector<32x128xf32>
    %c0_3 = arith.constant 0 : index
    %c0_4 = arith.constant 0 : index
    %3 = vector.load %arg3[%c0_3, %c0_4] : memref<32x1xf32, #tpu.memory_space<vmem>>, vector<32x1xf32>
    %4 = vector.broadcast %3 : vector<32x1xf32> to vector<32x128xf32>
    %5 = arith.addf %2, %4 : vector<32x128xf32>
    %6 = math.tanh %5 : vector<32x128xf32>
    %c0_5 = arith.constant 0 : index
    %c0_6 = arith.constant 0 : index
    %7 = vector.load %arg4[%c0_5, %c0_6] : memref<32x32xf32, #tpu.memory_space<vmem>>, vector<32x32xf32>
    %cst_7 = arith.constant dense<0.000000e+00> : vector<32x128xf32>
    %8 = tpu.matmul %7, %6, %cst_7 {dimension_numbers = #tpu.dot_dimension_numbers<[1], [0], [0], [1], [0, 0, 1, 1], [], []>} : vector<32x32xf32>, vector<32x128xf32>, vector<32x128xf32> -> vector<32x128xf32>
    %c0_8 = arith.constant 0 : index
    %c0_9 = arith.constant 0 : index
    %9 = vector.load %arg5[%c0_8, %c0_9] : memref<32x1xf32, #tpu.memory_space<vmem>>, vector<32x1xf32>
    %10 = vector.broadcast %9 : vector<32x1xf32> to vector<32x128xf32>
    %11 = arith.addf %8, %10 : vector<32x128xf32>
    %12 = math.tanh %11 : vector<32x128xf32>
    %c0_10 = arith.constant 0 : index
    %c0_11 = arith.constant 0 : index
    %13 = vector.load %arg6[%c0_10, %c0_11] : memref<1x32xf32, #tpu.memory_space<vmem>>, vector<1x32xf32>
    %cst_12 = arith.constant dense<0.000000e+00> : vector<1x128xf32>
    %14 = tpu.matmul %13, %12, %cst_12 {dimension_numbers = #tpu.dot_dimension_numbers<[1], [0], [0], [1], [0, 0, 1, 1], [], []>} : vector<1x32xf32>, vector<32x128xf32>, vector<1x128xf32> -> vector<1x128xf32>
    %c0_13 = arith.constant 0 : index
    %c0_14 = arith.constant 0 : index
    %15 = vector.load %arg7[%c0_13, %c0_14] : memref<1x1xf32, #tpu.memory_space<vmem>>, vector<1x1xf32>
    %16 = vector.broadcast %15 : vector<1x1xf32> to vector<1x128xf32>
    %17 = arith.addf %14, %16 : vector<1x128xf32>
    %c0_15 = arith.constant 0 : index
    %c0_16 = arith.constant 0 : index
    %18 = vector.load %arg8[%c0_15, %c0_16] : memref<1x128xf32, #tpu.memory_space<vmem>>, vector<1x128xf32>
    tpu.vector_store %arg8[%c0_15, %c0_16], %17 {strides = array<i32>} : memref<1x128xf32, #tpu.memory_space<vmem>>, vector<1x128xf32>,
    return
  }
  func.func @transform_0(%arg0: i32) -> (i32, i32) {
    %c0_i32 = arith.constant 0 : i32
    %c0_i32_0 = arith.constant 0 : i32
    return %c0_i32, %arg0 : i32, i32
  }
  func.func @transform_1(%arg0: i32) -> (i32, i32) {
    %c0_i32 = arith.constant 0 : i32
    %c0_i32_0 = arith.constant 0 : i32
    %c0_i32_1 = arith.constant 0 : i32
    return %c0_i32, %c0_i32_0 : i32, i32
  }
  func.func @transform_2(%arg0: i32) -> (i32, i32) {
    %c0_i32 = arith.constant 0 : i32
    %c0_i32_0 = arith.constant 0 : i32
    %c0_i32_1 = arith.constant 0 : i32
    return %c0_i32, %c0_i32_0 : i32, i32
  }
  func.func @transform_3(%arg0: i32) -> (i32, i32) {
    %c0_i32 = arith.constant 0 : i32
    %c0_i32_0 = arith.constant 0 : i32
    %c0_i32_1 = arith.constant 0 : i32
    return %c0_i32, %c0_i32_0 : i32, i32
  }
  func.func @transform_4(%arg0: i32) -> (i32, i32) {
    %c0_i32 = arith.constant 0 : i32
    %c0_i32_0 = arith.constant 0 : i32
    %c0_i32_1 = arith.constant 0 : i32
    return %c0_i32, %c0_i32_0 : i32, i32
  }
  func.func @transform_5(%arg0: i32) -> (i32, i32) {
    %c0_i32 = arith.constant 0 : i32
    %c0_i32_0 = arith.constant 0 : i32
    %c0_i32_1 = arith.constant 0 : i32
    return %c0_i32, %c0_i32_0 : i32, i32
  }
  func.func @transform_6(%arg0: i32) -> (i32, i32) {
    %c0_i32 = arith.constant 0 : i32
    %c0_i32_0 = arith.constant 0 : i32
    %c0_i32_1 = arith.constant 0 : i32
    return %c0_i32, %c0_i32_0 : i32, i32
  }
  func.func @transform_7(%arg0: i32) -> (i32, i32) {
    %c0_i32 = arith.constant 0 : i32
    %c0_i32_0 = arith.constant 0 : i32
    return %c0_i32, %arg0 : i32, i32
  }
}

</mosaic_0001>

<llo_original>
// kernel: _critic_forward_impl.1
$region0: #{_critic_forward_impl.1}
  #allocation0 [shape = 'u32[]', space=smem, size = 0x4, offset = 0x4, fixed_abs, tag = 'smem constant byte address 0x4 - core index']
  #allocation1 [shape = 'u32[72,128]{1,0:T(1,128)}', space=vmem, size = 0x9000, scoped, tag = 'internal scratch']
  #allocation2 [shape = 'f32[1,1]{1,0:T(1,128)S(1)}', space=vmem, size = 0x200, scoped, tag = 'scoped memory for _critic_forward_impl.1']
  %s0 = inlined_call_operand.vmem [shape: f32[16,128], index: 0, kind: input, shape index: {}]
  %s1 = inlined_call_operand.vmem [shape: f32[32,16], index: 1, kind: input, shape index: {}]
  %s2 = inlined_call_operand.vmem [shape: f32[32,1], index: 2, kind: input, shape index: {}]
  %s3 = inlined_call_operand.vmem [shape: f32[32,32], index: 3, kind: input, shape index: {}]
  %s4 = inlined_call_operand.vmem [shape: f32[32,1], index: 4, kind: input, shape index: {}]
  %s5 = inlined_call_operand.vmem [shape: f32[1,32], index: 5, kind: input, shape index: {}]
  %s6 = inlined_call_operand.<no memory space> [shape: f32[1,1], index: 6, kind: input, shape index: {}]
  %s7 = inlined_call_operand.vmem [shape: f32[1,128], index: 7, kind: output, shape index: {}]
  %s8 = sld [smem:[#allocation0]]
  $region38: #{_critic_forward_impl.1} parent=0
    _
  %s10 = ssub.s32 1, %s8
  %s11 = scalar_select 0, %s10, %s8
  %v12 = vstv %s6
  %13 = vst [vmem:[#allocation2] sm:$0x1] %v12
  // Predicated region
  $region2: #{_critic_forward_impl.1} parent=0 // pred_check
    _
  $region3: #{_critic_forward_impl.1} parent=0 // pred_check_branch
    %15 = sbr.rel (0) target = $region5
  $region4: #{_critic_forward_impl.1} parent=0 // pred_region
    _
  $region5: #{_critic_forward_impl.1} parent=0 // pred_fallthru
    _
  // Predicated region
  $region6: #{_critic_forward_impl.1} parent=0 // pred_check
    _
  $region7: #{_critic_forward_impl.1} parent=0 // pred_check_branch
    %17 = sbr.rel (0) target = $region9
  $region8: #{_critic_forward_impl.1} parent=0 // pred_region
    _
  $region9: #{_critic_forward_impl.1} parent=0 // pred_fallthru
    _
  // Predicated region
  $region10: #{_critic_forward_impl.1} parent=0 // pred_check
    _
  $region11: #{_critic_forward_impl.1} parent=0 // pred_check_branch
    %19 = sbr.rel (0) target = $region13
  $region12: #{_critic_forward_impl.1} parent=0 // pred_region
    _
  $region13: #{_critic_forward_impl.1} parent=0 // pred_fallthru
    _
  // Predicated region
  $region14: #{_critic_forward_impl.1} parent=0 // pred_check
    _
  $region15: #{_critic_forward_impl.1} parent=0 // pred_check_branch
    %21 = sbr.rel (0) target = $region17
  $region16: #{_critic_forward_impl.1} parent=0 // pred_region
    _
  $region17: #{_critic_forward_impl.1} parent=0 // pred_fallthru
    _
  // Predicated region
  $region18: #{_critic_forward_impl.1} parent=0 // pred_check
    _
  $region19: #{_critic_forward_impl.1} parent=0 // pred_check_branch
    %23 = sbr.rel (0) target = $region21
  $region20: #{_critic_forward_impl.1} parent=0 // pred_region
    _
  $region21: #{_critic_forward_impl.1} parent=0 // pred_fallthru
    _
  // Predicated region
  $region22: #{_critic_forward_impl.1} parent=0 // pred_check
    _
  $region23: #{_critic_forward_impl.1} parent=0 // pred_check_branch
    %25 = sbr.rel (0) target = $region25
  $region24: #{_critic_forward_impl.1} parent=0 // pred_region
    _
  $region25: #{_critic_forward_impl.1} parent=0 // pred_fallthru
    _
  // Predicated region
  $region26: #{_critic_forward_impl.1} parent=0 // pred_check
    _
  $region27: #{_critic_forward_impl.1} parent=0 // pred_check_branch
    %27 = sbr.rel (0) target = $region29
  $region28: #{_critic_forward_impl.1} parent=0 // pred_region
    _
  $region29: #{_critic_forward_impl.1} parent=0 // pred_fallthru
    _
  %v28 = vld [vmem:[%s0] sm:$0xff]
  %v29 = vld [vmem:[%s0 + $0x8] sm:$0xff]
  %v30 = vld [vmem:[%s1] sm:$0xff]
  %v31 = vld [vmem:[%s1 + $0x8] sm:$0xff]
  %v32 = vld [vmem:[%s1 + $0x10] sm:$0xff]
  %v33 = vld [vmem:[%s1 + $0x18] sm:$0xff]
  %v34 = vld [vmem:[%s2] sm:$0xff]
  %v35 = vld [vmem:[%s2 + $0x8] sm:$0xff]
  %v36 = vld [vmem:[%s2 + $0x10] sm:$0xff]
  %v37 = vld [vmem:[%s2 + $0x18] sm:$0xff]
  %39 = vset.pattern.permute.xlu0 0
  %40 = vperm.xlu0 %39, %v34
  %v41 = vpop.permute.xlu0 %40
  %44 = vset.pattern.permute.xlu0 0
  %45 = vperm.xlu0 %44, %v35
  %v46 = vpop.permute.xlu0 %45
  %49 = vset.pattern.permute.xlu0 0
  %50 = vperm.xlu0 %49, %v36
  %v51 = vpop.permute.xlu0 %50
  %54 = vset.pattern.permute.xlu0 0
  %55 = vperm.xlu0 %54, %v37
  %v56 = vpop.permute.xlu0 %55
  %vm58 = vcmask 130048
  %v60 = vsel %vm58, %v30, 0
  %v63 = vsel %vm58, %v31, 0
  %v66 = vsel %vm58, %v32, 0
  %v69 = vsel %vm58, %v33, 0
  %71 = vmatpush.msra.mxu0 0.0
  %72 = vmatpush.msra.mxu0 0.0
  %73 = vmatpush.msra.mxu0 0.0
  %74 = vmatpush.msra.mxu0 0.0
  %75 = vmatpush.msra.mxu0 0.0
  %76 = vmatpush.msra.mxu0 0.0
  %77 = vmatpush.msra.mxu0 0.0
  %78 = vmatpush.msra.mxu0 0.0
  %79 = vmatpush.msra.mxu0 0.0
  %80 = vmatpush.msra.mxu0 0.0
  %81 = vmatpush.msra.mxu0 0.0
  %82 = vmatpush.msra.mxu0 0.0
  %83 = vmatpush.msra.mxu0 0.0
  %84 = vmatpush.msra.mxu0 0.0
  %85 = vmatpush.msra.mxu0 %v29
  %86 = vmatpush.msra.mxu0 %v28
  %87 = vmatmul.f32.gmra.mxu0 %v60
  %v88 = vpop.f32.mrf.mxu0
  %v89 = vadd.f32 %v41, %v88
  %90 = vmatmul.f32.gmra.mxu0 %v63
  %v91 = vpop.f32.mrf.mxu0
  %v92 = vadd.f32 %v46, %v91
  %93 = vmatmul.f32.gmra.mxu0 %v66
  %v94 = vpop.f32.mrf.mxu0
  %v95 = vadd.f32 %v51, %v94
  %96 = vmatmul.f32.gmra.mxu0 %v69
  %v97 = vpop.f32.mrf.mxu0
  %v98 = vadd.f32 %v56, %v97
  %99 = vdwg.mxu0
  %v100 = vtanh.pop %v89
  %v101 = vtanh.pop %v92
  %v102 = vtanh.pop %v95
  %v103 = vtanh.pop %v98
  %v104 = vld [vmem:[%s3] sm:$0xff]
  %v105 = vld [vmem:[%s3 + $0x8] sm:$0xff]
  %v106 = vld [vmem:[%s3 + $0x10] sm:$0xff]
  %v107 = vld [vmem:[%s3 + $0x18] sm:$0xff]
  %v108 = vld [vmem:[%s4] sm:$0xff]
  %v109 = vld [vmem:[%s4 + $0x8] sm:$0xff]
  %v110 = vld [vmem:[%s4 + $0x10] sm:$0xff]
  %v111 = vld [vmem:[%s4 + $0x18] sm:$0xff]
  %113 = vset.pattern.permute.xlu0 0
  %114 = vperm.xlu0 %113, %v108
  %v115 = vpop.permute.xlu0 %114
  %118 = vset.pattern.permute.xlu0 0
  %119 = vperm.xlu0 %118, %v109
  %v120 = vpop.permute.xlu0 %119
  %123 = vset.pattern.permute.xlu0 0
  %124 = vperm.xlu0 %123, %v110
  %v125 = vpop.permute.xlu0 %124
  %128 = vset.pattern.permute.xlu0 0
  %129 = vperm.xlu0 %128, %v111
  %v130 = vpop.permute.xlu0 %129
  %vm132 = vcmask 261120
  %v134 = vsel %vm132, %v104, 0
  %v137 = vsel %vm132, %v105, 0
  %v140 = vsel %vm132, %v106, 0
  %v143 = vsel %vm132, %v107, 0
  %145 = vmatpush.msra.mxu0 0.0
  %146 = vmatpush.msra.mxu0 0.0
  %147 = vmatpush.msra.mxu0 0.0
  %148 = vmatpush.msra.mxu0 0.0
  %149 = vmatpush.msra.mxu0 0.0
  %150 = vmatpush.msra.mxu0 0.0
  %151 = vmatpush.msra.mxu0 0.0
  %152 = vmatpush.msra.mxu0 0.0
  %153 = vmatpush.msra.mxu0 0.0
  %154 = vmatpush.msra.mxu0 0.0
  %155 = vmatpush.msra.mxu0 0.0
  %156 = vmatpush.msra.mxu0 0.0
  %157 = vmatpush.msra.mxu0 %v103
  %158 = vmatpush.msra.mxu0 %v102
  %159 = vmatpush.msra.mxu0 %v101
  %160 = vmatpush.msra.mxu0 %v100
  %161 = vmatmul.f32.gmra.mxu0 %v134
  %v162 = vpop.f32.mrf.mxu0
  %v163 = vadd.f32 %v115, %v162
  %164 = vmatmul.f32.gmra.mxu0 %v137
  %v165 = vpop.f32.mrf.mxu0
  %v166 = vadd.f32 %v120, %v165
  %167 = vmatmul.f32.gmra.mxu0 %v140
  %v168 = vpop.f32.mrf.mxu0
  %v169 = vadd.f32 %v125, %v168
  %170 = vmatmul.f32.gmra.mxu0 %v143
  %v171 = vpop.f32.mrf.mxu0
  %v172 = vadd.f32 %v130, %v171
  %173 = vdwg.mxu0
  %v174 = vtanh.pop %v163
  %v175 = vtanh.pop %v166
  %v176 = vtanh.pop %v169
  %v177 = vtanh.pop %v172
  %v178 = vld [vmem:[%s5] sm:$0x1]
  %v179 = vld [vmem:[#allocation2] sm:$0x1]
  %181 = vset.pattern.permute.xlu0 0
  %182 = vperm.xlu0 %181, %v179
  %v183 = vpop.permute.xlu0 %182
  %v185 = vperm.slane %v183, 0
  %v187 = vsel %vm132, %v178, 0
  %189 = vmatpush.msra.mxu0 0.0
  %190 = vmatpush.msra.mxu0 0.0
  %191 = vmatpush.msra.mxu0 0.0
  %192 = vmatpush.msra.mxu0 0.0
  %193 = vmatpush.msra.mxu0 0.0
  %194 = vmatpush.msra.mxu0 0.0
  %195 = vmatpush.msra.mxu0 0.0
  %196 = vmatpush.msra.mxu0 0.0
  %197 = vmatpush.msra.mxu0 0.0
  %198 = vmatpush.msra.mxu0 0.0
  %199 = vmatpush.msra.mxu0 0.0
  %200 = vmatpush.msra.mxu0 0.0
  %201 = vmatpush.msra.mxu0 %v177
  %202 = vmatpush.msra.mxu0 %v176
  %203 = vmatpush.msra.mxu0 %v175
  %204 = vmatpush.msra.mxu0 %v174
  %205 = vmatmul.f32.gmra.mxu0 %v187
  %v206 = vpop.f32.mrf.mxu0
  %v207 = vadd.f32 %v185, %v206
  %208 = vdwg.mxu0
  %209 = vst [vmem:[%s7] sm:$0x1] %v207
  // Predicated region
  $region30: #{_critic_forward_impl.1} parent=0 // pred_check
    _
  $region31: #{_critic_forward_impl.1} parent=0 // pred_check_branch
    %211 = sbr.rel (0) target = $region33
  $region32: #{_critic_forward_impl.1} parent=0 // pred_region
    _
  $region33: #{_critic_forward_impl.1} parent=0 // pred_fallthru
    _
  // Predicated region
  $region34: #{_critic_forward_impl.1} parent=0 // pred_check
    _
  $region35: #{_critic_forward_impl.1} parent=0 // pred_check_branch
    %213 = sbr.rel (0) target = $region37
  $region36: #{_critic_forward_impl.1} parent=0 // pred_region
    _
  $region37: #{_critic_forward_impl.1} parent=0 // pred_fallthru
    _

</llo_original>
